<compile_context>
chip_gen: v7x
topology: tpu7x:2x2x1
jax: 0.10.0
libtpu: 0.0.40
codegen_flags: <defaults>
</compile_context>

<pallas_src>
import jax
import jax.numpy as jnp
import numpy as np
from jax.experimental import pallas as pl
from jax.experimental.pallas import tpu as pltpu

NUM_TYPES = 119       # Embedding(119, Fn)
NUM_Q = 18            # Embedding(18, Fq), index = doping_charge + 9
Z_PAD = 128           # z vocab padded to lane width (one-hot-matmul gather)
Q_PAD = 32            # q vocab padded to a small multiple of 16/8 (not 128)


def _round_up(x, m):
    return ((x + m - 1) // m) * m


# ----------------------------------------------------------------------------
# Kernel (feature-major: everything is [features, nodes])
# ----------------------------------------------------------------------------
def emb_block_q_kernel(zq_ref, w1z_ref, w1q_ref, w2_ref, out_ref):
    tile = out_ref.shape[1]
    cdt = w1z_ref.dtype                                   # compute dtype (f32 or bf16)
    one = jnp.ones((), dtype=cdt)
    zero = jnp.zeros((), dtype=cdt)

    idx_z = zq_ref[0:1, :]                                # [1, tile] atomic number
    idx_q = zq_ref[1:2, :]                                # [1, tile] charge index (+9)

    # Small split one-hots (128-row z, 32-row q), generated directly in cdt.
    row_z = jax.lax.broadcasted_iota(jnp.int32, (w1z_ref.shape[1], tile), 0)
    onehot_z = jnp.where(row_z == idx_z, one, zero)       # [128, tile]
    row_q = jax.lax.broadcasted_iota(jnp.int32, (w1q_ref.shape[1], tile), 0)
    onehot_q = jnp.where(row_q == idx_q, one, zero)       # [32, tile]

    # Fused gather + layer-1 (+ folded b1n/b1q and the b2 carrier row): two
    # MXU matmuls accumulated in f32.
    h_pre = (jnp.dot(w1z_ref[...], onehot_z, preferred_element_type=jnp.float32) +
             jnp.dot(w1q_ref[...], onehot_q, preferred_element_type=jnp.float32))
    h = jax.nn.softplus(h_pre)                            # [DH_pad, tile]; b2 row -> 1.0

    # Stacked layer-2 ([w2n | w2q | b2]) directly yields out_n + out_q + b2.
    out = jnp.dot(w2_ref[...], h.astype(cdt), preferred_element_type=jnp.float32)
    out_ref[...] = out.astype(out_ref.dtype)


# ----------------------------------------------------------------------------
# Wrapper
# ----------------------------------------------------------------------------
def embedding_block_q(atomic_numbers, doping_charge, packed, *, tile_n=2048,
                      node_major=False, out_dtype=jnp.float32):
    """atomic_numbers: int [N]; doping_charge: int [N] in [-9, 8].
    Returns node_attrs (== node_features, set_features=True):
      feature-major [Fn, N] by default (fuse the relayout downstream),
      or node-major [N, Fn] if node_major=True."""
    N = int(atomic_numbers.shape[0])
    Fn = packed["w2"].shape[0]

    # Tiling: biggest tile up to tile_n; for padded problems >= 256 nodes keep
    # >= 2 grid steps so the "parallel" axis shards across both TCs on v7x.
    n128 = _round_up(max(N, 1), 128)
    tile = min(_round_up(max(int(tile_n), 128), 128), n128)
    if n128 >= 256:
        tile = min(tile, _round_up(pl.cdiv(n128, 2), 128))
    n_pad = _round_up(n128, tile)
    grid = n_pad // tile

    # Indices, packed into one [2, n_pad] int32 array (single tiny DMA / step).
    # clip() guards one-hot aliasing for out-of-range inputs (valid inputs unchanged).
    idx_z = jnp.clip(atomic_numbers.astype(jnp.int32), 0, NUM_TYPES - 1)
    idx_q = jnp.clip(doping_charge.astype(jnp.int32) + 9, 0, NUM_Q - 1)
    zq = jnp.stack([jnp.pad(idx_z, (0, n_pad - N)),
                    jnp.pad(idx_q, (0, n_pad - N))], axis=0)

    w1z, w1q, w2 = packed["w1z"], packed["w1q"], packed["w2"]

    grid_spec = pltpu.PrefetchScalarGridSpec(
        num_scalar_prefetch=0,
        grid=(grid,),
        in_specs=[
            pl.BlockSpec((2, tile), lambda i: (0, i)),    # packed [z; q] indices
            pl.BlockSpec(w1z.shape, lambda i: (0, 0)),    # fused layer-1, z vocab
            pl.BlockSpec(w1q.shape, lambda i: (0, 0)),    # fused layer-1, q vocab
            pl.BlockSpec(w2.shape, lambda i: (0, 0)),     # stacked layer-2 (+b2 col)
        ],
        out_specs=pl.BlockSpec((Fn, tile), lambda i: (0, i)),
    )

    out_fm = pl.pallas_call(
        emb_block_q_kernel,
        out_shape=jax.ShapeDtypeStruct((Fn, n_pad), out_dtype),
        grid_spec=grid_spec,
        compiler_params=pltpu.CompilerParams(
            dimension_semantics=("parallel",)),
    )(zq, w1z, w1q, w2)

    out_fm = out_fm[:, :N]
    # TODO(synk): in the full model, fuse this feature->node relayout into the
    # downstream consumer instead of materializing a standalone transpose.
    return out_fm.T if node_major else out_fm


# ----------------------------------------------------------------------------
# Parameters (PyTorch layout) and kernel-side packing
# ----------------------------------------------------------------------------
def make_params(key, Fn, Fq):
    """PyTorch-layout params: Embedding [vocab, F]; Linear weight [out, in], bias [out]."""
    ks = jax.random.split(key, 10)
    s = 0.1
    return dict(
        emb=jax.random.normal(ks[0], (NUM_TYPES, Fn), jnp.float32) * s,
        emb_q=jax.random.normal(ks[1], (NUM_Q, Fq), jnp.float32) * s,
        # mlp_node = denseRegression(Fn->Fn, n_h=2): Linear(Fn,Fn)+Softplus, Linear(Fn,Fn)
        w1n=jax.random.normal(ks[2], (Fn, Fn), jnp.float32) * s,
        b1n=jax.random.normal(ks[3], (Fn,), jnp.float32) * s,
        w2n=jax.random.normal(ks[4], (Fn, Fn), jnp.float32) * s,
        b2n=jax.random.normal(ks[5], (Fn,), jnp.float32) * s,
        # mlp_q = denseRegression(Fq->Fn, n_h=2): Linear(Fq,Fq)+Softplus, Linear(Fq,Fn)
        w1q=jax.random.normal(ks[6], (Fq, Fq), jnp.float32) * s,
        b1q=jax.random.normal(ks[7], (Fq,), jnp.float32) * s,
        w2q=jax.random.normal(ks[8], (Fn, Fq), jnp.float32) * s,
        b2q=jax.random.normal(ks[9], (Fn,), jnp.float32) * s,
    )


def pack_params(p, *, compute_dtype=jnp.float32):
    """One-time packing: embedding gather + layer-1 (+all biases) folded into
    two vocab-column tables, layer-2 stacked with b2 as an extra column."""
    Fn = p["emb"].shape[1]
    Fq = p["emb_q"].shape[1]
    DH = Fn + Fq                              # fused hidden width (32+16=48)
    DH_pad = _round_up(DH + 1, 16)            # +1 row carries the folded b2 (-> 64)
    b2_row_val = float(np.log(np.e - 1.0))    # softplus(log(e-1)) == 1.0 exactly

    # z columns: layer-1 of mlp_node applied to emb rows, plus b1n; b1q and the
    # b2-carrier constant ride on the z block (z one-hot always fires once).
    w1z = jnp.zeros((DH_pad, Z_PAD), jnp.float32)
    w1z = w1z.at[0:Fn, 0:NUM_TYPES].set(p["w1n"] @ p["emb"].T + p["b1n"][:, None])
    w1z = w1z.at[Fn:DH, :].set(jnp.broadcast_to(p["b1q"][:, None], (Fq, Z_PAD)))
    w1z = w1z.at[DH, :].set(b2_row_val)

    # q columns: layer-1 of mlp_q applied to emb_q rows (bias already on z block).
    w1q = jnp.zeros((DH_pad, Q_PAD), jnp.float32)
    w1q = w1q.at[Fn:DH, 0:NUM_Q].set(p["w1q"] @ p["emb_q"].T)

    # Stacked layer-2: [w2n | w2q | (b2n+b2q)]; padded columns stay zero so the
    # softplus(0)=log(2) padding rows contribute nothing.
    w2 = jnp.zeros((Fn, DH_pad), jnp.float32)
    w2 = w2.at[:, 0:Fn].set(p["w2n"])
    w2 = w2.at[:, Fn:DH].set(p["w2q"])
    w2 = w2.at[:, DH].set(p["b2n"] + p["b2q"])

    cd = compute_dtype
    return dict(w1z=w1z.astype(cd), w1q=w1q.astype(cd), w2=w2.astype(cd))


# ----------------------------------------------------------------------------
# Pure-JAX reference (matches the PyTorch forward)
# ----------------------------------------------------------------------------
def reference(atomic_numbers, doping_charge, p):
    na = jnp.take(p["emb"], atomic_numbers.astype(jnp.int32), axis=0)
    qa = jnp.take(p["emb_q"], doping_charge.astype(jnp.int32) + 9, axis=0)
    h_n = jax.nn.softplus(na @ p["w1n"].T + p["b1n"])
    out_n = h_n @ p["w2n"].T + p["b2n"]
    h_q = jax.nn.softplus(qa @ p["w1q"].T + p["b1q"])
    out_q = h_q @ p["w2q"].T + p["b2q"]
    return out_n + out_q


if __name__ == "__main__":
    key = jax.random.PRNGKey(0)
    k_z, k_q, k_p, k_z2, k_q2 = jax.random.split(key, 5)

    N, Fn, Fq = 64, 32, 16
    atomic_numbers = jax.random.randint(k_z, (N,), 1, NUM_TYPES, dtype=jnp.int32)
    doping_charge = jax.random.randint(k_q, (N,), -9, 9, dtype=jnp.int32)

    params = make_params(k_p, Fn, Fq)
    packed = pack_params(params)

    node_attrs_fm = jax.block_until_ready(
        embedding_block_q(atomic_numbers, doping_charge, packed))
    # set_features=True: data[NODE_ATTRS] == data[NODE_FEATURES] == node_attrs
    data_out = {"node_attrs": node_attrs_fm, "node_features": node_attrs_fm}

    ref = reference(atomic_numbers, doping_charge, params)
    np.testing.assert_allclose(np.asarray(node_attrs_fm.T), np.asarray(ref),
                               rtol=1e-5, atol=1e-5)

    # Multi-step grid: N not a multiple of the tile.
    N2 = 300
    z2 = jax.random.randint(k_z2, (N2,), 1, NUM_TYPES, dtype=jnp.int32)
    q2 = jax.random.randint(k_q2, (N2,), -9, 9, dtype=jnp.int32)
    out2 = jax.block_until_ready(
        embedding_block_q(z2, q2, packed, tile_n=128, node_major=True))
    np.testing.assert_allclose(np.asarray(out2),
                               np.asarray(reference(z2, q2, params)),
                               rtol=1e-5, atol=1e-5)

    # Optional bf16 compute path (recommended on v6e/v7x, keep f32 on v5e):
    # exact one-hots, bf16 weights, f32 MXU accumulation.
    packed_bf16 = pack_params(params, compute_dtype=jnp.bfloat16)
    out_bf = jax.block_until_ready(
        embedding_block_q(z2, q2, packed_bf16, node_major=True))
    np.testing.assert_allclose(np.asarray(out_bf),
                               np.asarray(reference(z2, q2, params)),
                               rtol=3e-2, atol=3e-2)

    print("KERNEL_OK")
</pallas_src>

<mosaic_0001>
module attributes {stable_mosaic.version = 11 : i64} {
  func.func @emb_block_q_kernel(%arg0: i32, %arg1: memref<2x128xi32, #tpu.memory_space<vmem>>, %arg2: memref<64x128xf32, #tpu.memory_space<vmem>>, %arg3: memref<64x32xf32, #tpu.memory_space<vmem>>, %arg4: memref<32x64xf32, #tpu.memory_space<vmem>>, %arg5: memref<32x128xf32, #tpu.memory_space<vmem>>) attributes {dimension_semantics = [#tpu.dimension_semantics<parallel>], iteration_bounds = array<i64: 1>, scalar_prefetch = 0 : i64, scratch_operands = 0 : i64, tpu.core_type = #tpu.core_type<tc>, window_params = [{transform_indices = @transform_0, window_bounds = array<i64: 2, 128>}, {pipeline_mode = #tpu.pipeline_mode<synchronous>, transform_indices = @transform_1, window_bounds = array<i64: 64, 128>}, {pipeline_mode = #tpu.pipeline_mode<synchronous>, transform_indices = @transform_2, window_bounds = array<i64: 64, 32>}, {pipeline_mode = #tpu.pipeline_mode<synchronous>, transform_indices = @transform_3, window_bounds = array<i64: 32, 64>}, {transform_indices = @transform_4, window_bounds = array<i64: 32, 128>}]} {
    %c0 = arith.constant 0 : index
    %c0_0 = arith.constant 0 : index
    %0 = vector.load %arg1[%c0, %c0_0] : memref<2x128xi32, #tpu.memory_space<vmem>>, vector<1x128xi32>
    %c1 = arith.constant 1 : index
    %c0_1 = arith.constant 0 : index
    %1 = vector.load %arg1[%c1, %c0_1] : memref<2x128xi32, #tpu.memory_space<vmem>>, vector<1x128xi32>
    %2 = tpu.iota {dimensions = array<i32: 0>} : vector<128x128xi32>
    %3 = vector.broadcast %0 : vector<1x128xi32> to vector<128x128xi32>
    %4 = arith.cmpi eq, %2, %3 : vector<128x128xi32>
    %cst = arith.constant 1.000000e+00 : f32
    %cst_2 = arith.constant 0.000000e+00 : f32
    %5 = vector.broadcast %cst : f32 to vector<128x128xf32>
    %6 = vector.broadcast %cst_2 : f32 to vector<128x128xf32>
    %7 = arith.select %4, %5, %6 : vector<128x128xi1>, vector<128x128xf32>
    %8 = tpu.iota {dimensions = array<i32: 0>} : vector<32x128xi32>
    %9 = vector.broadcast %1 : vector<1x128xi32> to vector<32x128xi32>
    %10 = arith.cmpi eq, %8, %9 : vector<32x128xi32>
    %cst_3 = arith.constant 1.000000e+00 : f32
    %cst_4 = arith.constant 0.000000e+00 : f32
    %11 = vector.broadcast %cst_3 : f32 to vector<32x128xf32>
    %12 = vector.broadcast %cst_4 : f32 to vector<32x128xf32>
    %13 = arith.select %10, %11, %12 : vector<32x128xi1>, vector<32x128xf32>
    %c0_5 = arith.constant 0 : index
    %c0_6 = arith.constant 0 : index
    %14 = vector.load %arg2[%c0_5, %c0_6] : memref<64x128xf32, #tpu.memory_space<vmem>>, vector<64x128xf32>
    %cst_7 = arith.constant dense<0.000000e+00> : vector<64x128xf32>
    %15 = tpu.matmul %14, %7, %cst_7 {dimension_numbers = #tpu.dot_dimension_numbers<[1], [0], [0], [1], [0, 0, 1, 1], [], []>} : vector<64x128xf32>, vector<128x128xf32>, vector<64x128xf32> -> vector<64x128xf32>
    %c0_8 = arith.constant 0 : index
    %c0_9 = arith.constant 0 : index
    %16 = vector.load %arg3[%c0_8, %c0_9] : memref<64x32xf32, #tpu.memory_space<vmem>>, vector<64x32xf32>
    %cst_10 = arith.constant dense<0.000000e+00> : vector<64x128xf32>
    %17 = tpu.matmul %16, %13, %cst_10 {dimension_numbers = #tpu.dot_dimension_numbers<[1], [0], [0], [1], [0, 0, 1, 1], [], []>} : vector<64x32xf32>, vector<32x128xf32>, vector<64x128xf32> -> vector<64x128xf32>
    %18 = arith.addf %15, %17 : vector<64x128xf32>
    %cst_11 = arith.constant 0.000000e+00 : f32
    %19 = vector.broadcast %cst_11 : f32 to vector<64x128xf32>
    %20 = arith.maximumf %18, %19 : vector<64x128xf32>
    %21 = vector.broadcast %cst_11 : f32 to vector<64x128xf32>
    %22 = arith.subf %18, %21 : vector<64x128xf32>
    %23 = arith.cmpf one, %22, %22 : vector<64x128xf32>
    %24 = vector.broadcast %cst_11 : f32 to vector<64x128xf32>
    %25 = arith.addf %18, %24 : vector<64x128xf32>
    %26 = math.absf %22 : vector<64x128xf32>
    %cst_12 = arith.constant 0.000000e+00 : f32
    %27 = vector.broadcast %cst_12 : f32 to vector<64x128xf32>
    %28 = arith.subf %27, %26 : vector<64x128xf32>
    %29 = math.exp %28 : vector<64x128xf32>
    %30 = math.log1p %29 : vector<64x128xf32>
    %31 = arith.addf %20, %30 : vector<64x128xf32>
    %32 = arith.select %23, %25, %31 : vector<64x128xi1>, vector<64x128xf32>
    %c0_13 = arith.constant 0 : index
    %c0_14 = arith.constant 0 : index
    %33 = vector.load %arg4[%c0_13, %c0_14] : memref<32x64xf32, #tpu.memory_space<vmem>>, vector<32x64xf32>
    %cst_15 = arith.constant dense<0.000000e+00> : vector<32x128xf32>
    %34 = tpu.matmul %33, %32, %cst_15 {dimension_numbers = #tpu.dot_dimension_numbers<[1], [0], [0], [1], [0, 0, 1, 1], [], []>} : vector<32x64xf32>, vector<64x128xf32>, vector<32x128xf32> -> vector<32x128xf32>
    %c0_16 = arith.constant 0 : index
    %c0_17 = arith.constant 0 : index
    %35 = vector.load %arg5[%c0_16, %c0_17] : memref<32x128xf32, #tpu.memory_space<vmem>>, vector<32x128xf32>
    tpu.vector_store %arg5[%c0_16, %c0_17], %34 {strides = array<i32>} : memref<32x128xf32, #tpu.memory_space<vmem>>, vector<32x128xf32>,
    return
  }
  func.func @transform_0(%arg0: i32) -> (i32, i32) {
    %c0_i32 = arith.constant 0 : i32
    %c0_i32_0 = arith.constant 0 : i32
    return %c0_i32, %arg0 : i32, i32
  }
  func.func @transform_1(%arg0: i32) -> (i32, i32) {
    %c0_i32 = arith.constant 0 : i32
    %c0_i32_0 = arith.constant 0 : i32
    %c0_i32_1 = arith.constant 0 : i32
    return %c0_i32, %c0_i32_0 : i32, i32
  }
  func.func @transform_2(%arg0: i32) -> (i32, i32) {
    %c0_i32 = arith.constant 0 : i32
    %c0_i32_0 = arith.constant 0 : i32
    %c0_i32_1 = arith.constant 0 : i32
    return %c0_i32, %c0_i32_0 : i32, i32
  }
  func.func @transform_3(%arg0: i32) -> (i32, i32) {
    %c0_i32 = arith.constant 0 : i32
    %c0_i32_0 = arith.constant 0 : i32
    %c0_i32_1 = arith.constant 0 : i32
    return %c0_i32, %c0_i32_0 : i32, i32
  }
  func.func @transform_4(%arg0: i32) -> (i32, i32) {
    %c0_i32 = arith.constant 0 : i32
    %c0_i32_0 = arith.constant 0 : i32
    return %c0_i32, %arg0 : i32, i32
  }
}

</mosaic_0001>

<llo_original>
// kernel: tpu_custom_call.1
$region0: #{tpu_custom_call.1}
  #allocation0 [shape = 'u32[]', space=smem, size = 0x4, offset = 0x4, fixed_abs, tag = 'smem constant byte address 0x4 - core index']
  #allocation1 [shape = 'u32[144,128]{1,0:T(1,128)}', space=vmem, size = 0x12000, scoped, tag = 'internal scratch']
  %s0 = inlined_call_operand.vmem [shape: s32[2,128], index: 0, kind: input, shape index: {}]
  %s1 = inlined_call_operand.vmem [shape: f32[64,128], index: 1, kind: input, shape index: {}]
  %s2 = inlined_call_operand.vmem [shape: f32[64,32], index: 2, kind: input, shape index: {}]
  %s3 = inlined_call_operand.vmem [shape: f32[32,64], index: 3, kind: input, shape index: {}]
  %s4 = inlined_call_operand.hbm [shape: f32[32,128], index: 4, kind: output, shape index: {}]
  %s5 = sld [smem:[#allocation0]]
  $region26: #{tpu_custom_call.1} parent=0
    _
  %s7 = ssub.s32 1, %s5
  %s8 = scalar_select 0, %s7, %s5
  $region1: #{tpu_custom_call.1} parent=0
    #allocation2 [shape = 'u8[16384]{0}', space=vmem, size = 0x4000, scoped, tag = 'output window, operand 0, single buffered']
    #allocation3 [shape = 's32[1]{0}', space=sflag, size = 0x4, scoped, tag = 'scoped memory for tpu_custom_call.1']
    %9 = vsyncpa [#allocation3], 0
    // Predicated region
    $region2: #{tpu_custom_call.1} parent=1 // pred_check
      _
    $region3: #{tpu_custom_call.1} parent=1 // pred_check_branch
      %11 = sbr.rel (0) target = $region5
    $region4: #{tpu_custom_call.1} parent=1 // pred_region
      _
    $region5: #{tpu_custom_call.1} parent=1 // pred_fallthru
      _
    // Predicated region
    $region6: #{tpu_custom_call.1} parent=1 // pred_check
      _
    $region7: #{tpu_custom_call.1} parent=1 // pred_check_branch
      %13 = sbr.rel (0) target = $region9
    $region8: #{tpu_custom_call.1} parent=1 // pred_region
      _
    $region9: #{tpu_custom_call.1} parent=1 // pred_fallthru
      _
    // Predicated region
    $region10: #{tpu_custom_call.1} parent=1 // pred_check
      _
    $region11: #{tpu_custom_call.1} parent=1 // pred_check_branch
      %15 = sbr.rel (0) target = $region13
    $region12: #{tpu_custom_call.1} parent=1 // pred_region
      _
    $region13: #{tpu_custom_call.1} parent=1 // pred_fallthru
      _
    // Predicated region
    $region14: #{tpu_custom_call.1} parent=1 // pred_check
      _
    $region15: #{tpu_custom_call.1} parent=1 // pred_check_branch
      %17 = sbr.rel (0) target = $region17
    $region16: #{tpu_custom_call.1} parent=1 // pred_region
      _
    $region17: #{tpu_custom_call.1} parent=1 // pred_fallthru
      _
    %v18 = vld [vmem:[%s0] sm:$0x1]
    %v19 = vld [vmem:[%s0 + $0x1] sm:$0x1]
    %v20 = vlaneseq
    %v21 = vshrl.u32 %v20, 7
    %v22 = vadd.s32 %v21, 8
    %v23 = vadd.s32 %v21, 16
    %v24 = vadd.s32 %v21, 24
    %v25 = vadd.s32 %v21, 32
    %v26 = vadd.s32 %v21, 40
    %v27 = vadd.s32 %v21, 48
    %v28 = vadd.s32 %v21, 56
    %v29 = vadd.s32 %v21, 64
    %v30 = vadd.s32 %v21, 72
    %v31 = vadd.s32 %v21, 80
    %v32 = vadd.s32 %v21, 88
    %v33 = vadd.s32 %v21, 96
    %v34 = vadd.s32 %v21, 104
    %v35 = vadd.s32 %v21, 112
    %v36 = vadd.s32 %v21, 120
    %v37 = vlaneseq
    %v38 = vshrl.u32 %v37, 7
    %v39 = vsub.s32 0, %v38
    %v40 = vrot.slane %v18, %v39
    %vm41 = vcmp.eq.s32.totalorder %v21, %v40
    %vm42 = vcmp.eq.s32.totalorder %v22, %v40
    %vm43 = vcmp.eq.s32.totalorder %v23, %v40
    %vm44 = vcmp.eq.s32.totalorder %v24, %v40
    %vm45 = vcmp.eq.s32.totalorder %v25, %v40
    %vm46 = vcmp.eq.s32.totalorder %v26, %v40
    %vm47 = vcmp.eq.s32.totalorder %v27, %v40
    %vm48 = vcmp.eq.s32.totalorder %v28, %v40
    %vm49 = vcmp.eq.s32.totalorder %v29, %v40
    %vm50 = vcmp.eq.s32.totalorder %v30, %v40
    %vm51 = vcmp.eq.s32.totalorder %v31, %v40
    %vm52 = vcmp.eq.s32.totalorder %v32, %v40
    %vm53 = vcmp.eq.s32.totalorder %v33, %v40
    %vm54 = vcmp.eq.s32.totalorder %v34, %v40
    %vm55 = vcmp.eq.s32.totalorder %v35, %v40
    %vm56 = vcmp.eq.s32.totalorder %v36, %v40
    %v57 = vsel %vm41, 1.0, 0.0
    %v58 = vsel %vm42, 1.0, 0.0
    %v59 = vsel %vm43, 1.0, 0.0
    %v60 = vsel %vm44, 1.0, 0.0
    %v61 = vsel %vm45, 1.0, 0.0
    %v62 = vsel %vm46, 1.0, 0.0
    %v63 = vsel %vm47, 1.0, 0.0
    %v64 = vsel %vm48, 1.0, 0.0
    %v65 = vsel %vm49, 1.0, 0.0
    %v66 = vsel %vm50, 1.0, 0.0
    %v67 = vsel %vm51, 1.0, 0.0
    %v68 = vsel %vm52, 1.0, 0.0
    %v69 = vsel %vm53, 1.0, 0.0
    %v70 = vsel %vm54, 1.0, 0.0
    %v71 = vsel %vm55, 1.0, 0.0
    %v72 = vsel %vm56, 1.0, 0.0
    %v73 = vlaneseq
    %v74 = vshrl.u32 %v73, 7
    %v75 = vsub.s32 0, %v74
    %v76 = vrot.slane %v19, %v75
    %vm77 = vcmp.eq.s32.totalorder %v21, %v76
    %vm78 = vcmp.eq.s32.totalorder %v22, %v76
    %vm79 = vcmp.eq.s32.totalorder %v23, %v76
    %vm80 = vcmp.eq.s32.totalorder %v24, %v76
    %v81 = vsel %vm77, 1.0, 0.0
    %v82 = vsel %vm78, 1.0, 0.0
    %v83 = vsel %vm79, 1.0, 0.0
    %v84 = vsel %vm80, 1.0, 0.0
    %v85 = vld [vmem:[%s1] sm:$0xff]
    %v86 = vld [vmem:[%s1 + $0x8] sm:$0xff]
    %v87 = vld [vmem:[%s1 + $0x10] sm:$0xff]
    %v88 = vld [vmem:[%s1 + $0x18] sm:$0xff]
    %v89 = vld [vmem:[%s1 + $0x20] sm:$0xff]
    %v90 = vld [vmem:[%s1 + $0x28] sm:$0xff]
    %v91 = vld [vmem:[%s1 + $0x30] sm:$0xff]
    %v92 = vld [vmem:[%s1 + $0x38] sm:$0xff]
    %v93 = vld [vmem:[%s2] sm:$0xff]
    %v94 = vld [vmem:[%s2 + $0x8] sm:$0xff]
    %v95 = vld [vmem:[%s2 + $0x10] sm:$0xff]
    %v96 = vld [vmem:[%s2 + $0x18] sm:$0xff]
    %v97 = vld [vmem:[%s2 + $0x20] sm:$0xff]
    %v98 = vld [vmem:[%s2 + $0x28] sm:$0xff]
    %v99 = vld [vmem:[%s2 + $0x30] sm:$0xff]
    %v100 = vld [vmem:[%s2 + $0x38] sm:$0xff]
    %vm101 = vcmask 261120
    %v103 = vsel %vm101, %v93, 0
    %v106 = vsel %vm101, %v94, 0
    %v109 = vsel %vm101, %v95, 0
    %v112 = vsel %vm101, %v96, 0
    %v115 = vsel %vm101, %v97, 0
    %v118 = vsel %vm101, %v98, 0
    %v121 = vsel %vm101, %v99, 0
    %v124 = vsel %vm101, %v100, 0
    %126 = vmatprep.subr.mxu0 0.0
    %127 = vmatpush1.msra.mxu0 %v81
    %128 = vmatprep.subr.mxu0 0.0
    %129 = vmatpush1.msra.mxu0 %v82
    %130 = vmatprep.subr.mxu0 0.0
    %131 = vmatpush1.msra.mxu0 %v83
    %132 = vmatprep.subr.mxu0 0.0
    %133 = vmatpush1.msra.mxu0 %v84
    %134 = vmatprep.subr.mxu0 0.0
    %135 = vmatpush1.msra.mxu0 0.0
    %136 = vmatprep.subr.mxu0 0.0
    %137 = vmatpush1.msra.mxu0 0.0
    %138 = vmatprep.subr.mxu0 0.0
    %139 = vmatpush1.msra.mxu0 0.0
    %140 = vmatprep.subr.mxu0 0.0
    %141 = vmatpush1.msra.mxu0 0.0
    %142 = vmatprep.subr.mxu0 0.0
    %143 = vmatpush1.msra.mxu0 0.0
    %144 = vmatprep.subr.mxu0 0.0
    %145 = vmatpush1.msra.mxu0 0.0
    %146 = vmatprep.subr.mxu0 0.0
    %147 = vmatpush1.msra.mxu0 0.0
    %148 = vmatprep.subr.mxu0 0.0
    %149 = vmatpush1.msra.mxu0 0.0
    %150 = vmatprep.subr.mxu0 0.0
    %151 = vmatpush1.msra.mxu0 0.0
    %152 = vmatprep.subr.mxu0 0.0
    %153 = vmatpush1.msra.mxu0 0.0
    %154 = vmatprep.subr.mxu0 0.0
    %155 = vmatpush1.msra.mxu0 0.0
    %156 = vmatprep.subr.mxu0 0.0
    %157 = vmatpush1.msra.mxu0 0.0
    %158 = vmatprep.subr.mxu0 0.0
    %159 = vmatpush1.msra.mxu0 0.0
    %160 = vmatprep.subr.mxu0 0.0
    %161 = vmatpush1.msra.mxu0 0.0
    %162 = vmatprep.subr.mxu0 0.0
    %163 = vmatpush1.msra.mxu0 0.0
    %164 = vmatprep.subr.mxu0 0.0
    %165 = vmatpush1.msra.mxu0 0.0
    %166 = vmatprep.subr.mxu0 0.0
    %167 = vmatpush1.msra.mxu0 0.0
    %168 = vmatprep.subr.mxu0 0.0
    %169 = vmatpush1.msra.mxu0 0.0
    %170 = vmatprep.subr.mxu0 0.0
    %171 = vmatpush1.msra.mxu0 0.0
    %172 = vmatprep.subr.mxu0 0.0
    %173 = vmatpush1.msra.mxu0 0.0
    %174 = vmatprep.subr.mxu0 0.0
    %175 = vmatpush1.msra.mxu0 0.0
    %176 = vmatprep.subr.mxu0 0.0
    %177 = vmatpush1.msra.mxu0 0.0
    %178 = vmatprep.subr.mxu0 0.0
    %179 = vmatpush1.msra.mxu0 0.0
    %180 = vmatprep.subr.mxu0 0.0
    %181 = vmatpush1.msra.mxu0 0.0
    %182 = vmatprep.subr.mxu0 0.0
    %183 = vmatpush1.msra.mxu0 0.0
    %184 = vmatprep.subr.mxu0 0.0
    %185 = vmatpush1.msra.mxu0 0.0
    %186 = vmatprep.subr.mxu0 0.0
    %187 = vmatpush1.msra.mxu0 0.0
    %188 = vmatprep.subr.mxu0 0.0
    %189 = vmatpush1.msra.mxu0 0.0
    %190 = vmatprep.mubr.f32.mxu0 0.0
    %191 = vmatmul.mubr.f32.gmra.mrb[0].mxu0 %v103
    %v192 = vpop.f32.mrb[0].mxu0
    %v193 = vadd.f32 0.0, %v192
    %v194 = vpop.f32.mrb[0].mxu0
    %195 = vmatprep.mubr.f32.mxu0 0.0
    %196 = vmatmul.mubr.f32.gmra.mrb[0].mxu0 %v106
    %v197 = vpop.f32.mrb[0].mxu0
    %v198 = vadd.f32 0.0, %v197
    %v199 = vpop.f32.mrb[0].mxu0
    %200 = vmatprep.mubr.f32.mxu0 0.0
    %201 = vmatmul.mubr.f32.gmra.mrb[0].mxu0 %v109
    %v202 = vpop.f32.mrb[0].mxu0
    %v203 = vadd.f32 0.0, %v202
    %v204 = vpop.f32.mrb[0].mxu0
    %205 = vmatprep.mubr.f32.mxu0 0.0
    %206 = vmatmul.mubr.f32.gmra.mrb[0].mxu0 %v112
    %v207 = vpop.f32.mrb[0].mxu0
    %v208 = vadd.f32 0.0, %v207
    %v209 = vpop.f32.mrb[0].mxu0
    %210 = vmatprep.mubr.f32.mxu0 0.0
    %211 = vmatmul.mubr.f32.gmra.mrb[0].mxu0 %v115
    %v212 = vpop.f32.mrb[0].mxu0
    %v213 = vadd.f32 0.0, %v212
    %v214 = vpop.f32.mrb[0].mxu0
    %215 = vmatprep.mubr.f32.mxu0 0.0
    %216 = vmatmul.mubr.f32.gmra.mrb[0].mxu0 %v118
    %v217 = vpop.f32.mrb[0].mxu0
    %v218 = vadd.f32 0.0, %v217
    %v219 = vpop.f32.mrb[0].mxu0
    %220 = vmatprep.mubr.f32.mxu0 0.0
    %221 = vmatmul.mubr.f32.gmra.mrb[0].mxu0 %v121
    %v222 = vpop.f32.mrb[0].mxu0
    %v223 = vadd.f32 0.0, %v222
    %v224 = vpop.f32.mrb[0].mxu0
    %225 = vmatprep.mubr.f32.mxu0 0.0
    %226 = vmatmul.mubr.f32.gmra.mrb[0].mxu0 %v124
    %v227 = vpop.f32.mrb[0].mxu0
    %v228 = vadd.f32 0.0, %v227
    %v229 = vpop.f32.mrb[0].mxu0
    %230 = vdwg.mxu0
    %231 = vmatprep.subr.mxu0 0.0
    %232 = vmatpush1.msra.mxu0 %v57
    %233 = vmatprep.subr.mxu0 0.0
    %234 = vmatpush1.msra.mxu0 %v58
    %235 = vmatprep.subr.mxu0 0.0
    %236 = vmatpush1.msra.mxu0 %v59
    %237 = vmatprep.subr.mxu0 0.0
    %238 = vmatpush1.msra.mxu0 %v60
    %239 = vmatprep.subr.mxu0 0.0
    %240 = vmatpush1.msra.mxu0 %v61
    %241 = vmatprep.subr.mxu0 0.0
    %242 = vmatpush1.msra.mxu0 %v62
    %243 = vmatprep.subr.mxu0 0.0
    %244 = vmatpush1.msra.mxu0 %v63
    %245 = vmatprep.subr.mxu0 0.0
    %246 = vmatpush1.msra.mxu0 %v64
    %247 = vmatprep.subr.mxu0 0.0
    %248 = vmatpush1.msra.mxu0 %v65
    %249 = vmatprep.subr.mxu0 0.0
    %250 = vmatpush1.msra.mxu0 %v66
    %251 = vmatprep.subr.mxu0 0.0
    %252 = vmatpush1.msra.mxu0 %v67
    %253 = vmatprep.subr.mxu0 0.0
    %254 = vmatpush1.msra.mxu0 %v68
    %255 = vmatprep.subr.mxu0 0.0
    %256 = vmatpush1.msra.mxu0 %v69
    %257 = vmatprep.subr.mxu0 0.0
    %258 = vmatpush1.msra.mxu0 %v70
    %259 = vmatprep.subr.mxu0 0.0
    %260 = vmatpush1.msra.mxu0 %v71
    %261 = vmatprep.subr.mxu0 0.0
    %262 = vmatpush1.msra.mxu0 %v72
    %263 = vmatprep.subr.mxu0 0.0
    %264 = vmatpush1.msra.mxu0 0.0
    %265 = vmatprep.subr.mxu0 0.0
    %266 = vmatpush1.msra.mxu0 0.0
    %267 = vmatprep.subr.mxu0 0.0
    %268 = vmatpush1.msra.mxu0 0.0
    %269 = vmatprep.subr.mxu0 0.0
    %270 = vmatpush1.msra.mxu0 0.0
    %271 = vmatprep.subr.mxu0 0.0
    %272 = vmatpush1.msra.mxu0 0.0
    %273 = vmatprep.subr.mxu0 0.0
    %274 = vmatpush1.msra.mxu0 0.0
    %275 = vmatprep.subr.mxu0 0.0
    %276 = vmatpush1.msra.mxu0 0.0
    %277 = vmatprep.subr.mxu0 0.0
    %278 = vmatpush1.msra.mxu0 0.0
    %279 = vmatprep.subr.mxu0 0.0
    %280 = vmatpush1.msra.mxu0 0.0
    %281 = vmatprep.subr.mxu0 0.0
    %282 = vmatpush1.msra.mxu0 0.0
    %283 = vmatprep.subr.mxu0 0.0
    %284 = vmatpush1.msra.mxu0 0.0
    %285 = vmatprep.subr.mxu0 0.0
    %286 = vmatpush1.msra.mxu0 0.0
    %287 = vmatprep.subr.mxu0 0.0
    %288 = vmatpush1.msra.mxu0 0.0
    %289 = vmatprep.subr.mxu0 0.0
    %290 = vmatpush1.msra.mxu0 0.0
    %291 = vmatprep.subr.mxu0 0.0
    %292 = vmatpush1.msra.mxu0 0.0
    %293 = vmatprep.subr.mxu0 0.0
    %294 = vmatpush1.msra.mxu0 0.0
    %295 = vmatprep.mubr.f32.mxu0 0.0
    %296 = vmatmul.mubr.f32.gmra.mrb[0].mxu0 %v85
    %v297 = vpop.f32.mrb[0].mxu0
    %v298 = vadd.f32 %v193, %v297
    %v299 = vpop.f32.mrb[0].mxu0
    %300 = vmatprep.mubr.f32.mxu0 0.0
    %301 = vmatmul.mubr.f32.gmra.mrb[0].mxu0 %v86
    %v302 = vpop.f32.mrb[0].mxu0
    %v303 = vadd.f32 %v198, %v302
    %v304 = vpop.f32.mrb[0].mxu0
    %305 = vmatprep.mubr.f32.mxu0 0.0
    %306 = vmatmul.mubr.f32.gmra.mrb[0].mxu0 %v87
    %v307 = vpop.f32.mrb[0].mxu0
    %v308 = vadd.f32 %v203, %v307
    %v309 = vpop.f32.mrb[0].mxu0
    %310 = vmatprep.mubr.f32.mxu0 0.0
    %311 = vmatmul.mubr.f32.gmra.mrb[0].mxu0 %v88
    %v312 = vpop.f32.mrb[0].mxu0
    %v313 = vadd.f32 %v208, %v312
    %v314 = vpop.f32.mrb[0].mxu0
    %315 = vmatprep.mubr.f32.mxu0 0.0
    %316 = vmatmul.mubr.f32.gmra.mrb[0].mxu0 %v89
    %v317 = vpop.f32.mrb[0].mxu0
    %v318 = vadd.f32 %v213, %v317
    %v319 = vpop.f32.mrb[0].mxu0
    %320 = vmatprep.mubr.f32.mxu0 0.0
    %321 = vmatmul.mubr.f32.gmra.mrb[0].mxu0 %v90
    %v322 = vpop.f32.mrb[0].mxu0
    %v323 = vadd.f32 %v218, %v322
    %v324 = vpop.f32.mrb[0].mxu0
    %325 = vmatprep.mubr.f32.mxu0 0.0
    %326 = vmatmul.mubr.f32.gmra.mrb[0].mxu0 %v91
    %v327 = vpop.f32.mrb[0].mxu0
    %v328 = vadd.f32 %v223, %v327
    %v329 = vpop.f32.mrb[0].mxu0
    %330 = vmatprep.mubr.f32.mxu0 0.0
    %331 = vmatmul.mubr.f32.gmra.mrb[0].mxu0 %v92
    %v332 = vpop.f32.mrb[0].mxu0
    %v333 = vadd.f32 %v228, %v332
    %v334 = vpop.f32.mrb[0].mxu0
    %335 = vdwg.mxu0
    %v336 = vmax.f32 %v298, 0.0
    %v337 = vmax.f32 %v303, 0.0
    %v338 = vmax.f32 %v308, 0.0
    %v339 = vmax.f32 %v313, 0.0
    %v340 = vmax.f32 %v318, 0.0
    %v341 = vmax.f32 %v323, 0.0
    %v342 = vmax.f32 %v328, 0.0
    %v343 = vmax.f32 %v333, 0.0
    %vm344 = vcmp.ne.f32.partialorder %v298, %v298
    %vm345 = vcmp.ne.f32.partialorder %v303, %v303
    %vm346 = vcmp.ne.f32.partialorder %v308, %v308
    %vm347 = vcmp.ne.f32.partialorder %v313, %v313
    %vm348 = vcmp.ne.f32.partialorder %v318, %v318
    %vm349 = vcmp.ne.f32.partialorder %v323, %v323
    %vm350 = vcmp.ne.f32.partialorder %v328, %v328
    %vm351 = vcmp.ne.f32.partialorder %v333, %v333
    %v352 = vadd.f32 %v298, 0.0
    %v353 = vadd.f32 %v303, 0.0
    %v354 = vadd.f32 %v308, 0.0
    %v355 = vadd.f32 %v313, 0.0
    %v356 = vadd.f32 %v318, 0.0
    %v357 = vadd.f32 %v323, 0.0
    %v358 = vadd.f32 %v328, 0.0
    %v359 = vadd.f32 %v333, 0.0
    %v360 = vand.u32 2147483647, %v298
    %v361 = vand.u32 2147483647, %v303
    %v362 = vand.u32 2147483647, %v308
    %v363 = vand.u32 2147483647, %v313
    %v364 = vand.u32 2147483647, %v318
    %v365 = vand.u32 2147483647, %v323
    %v366 = vand.u32 2147483647, %v328
    %v367 = vand.u32 2147483647, %v333
    %v368 = vsub.f32 0.0, %v360
    %v369 = vsub.f32 0.0, %v361
    %v370 = vsub.f32 0.0, %v362
    %v371 = vsub.f32 0.0, %v363
    %v372 = vsub.f32 0.0, %v364
    %v373 = vsub.f32 0.0, %v365
    %v374 = vsub.f32 0.0, %v366
    %v375 = vsub.f32 0.0, %v367
    %v376 = vmul.f32 %v368, 1.442695
    %v377 = vpow.pop %v376
    %v378 = vmul.f32 %v369, 1.442695
    %v379 = vpow.pop %v378
    %v380 = vmul.f32 %v370, 1.442695
    %v381 = vpow.pop %v380
    %v382 = vmul.f32 %v371, 1.442695
    %v383 = vpow.pop %v382
    %v384 = vmul.f32 %v372, 1.442695
    %v385 = vpow.pop %v384
    %v386 = vmul.f32 %v373, 1.442695
    %v387 = vpow.pop %v386
    %v388 = vmul.f32 %v374, 1.442695
    %v389 = vpow.pop %v388
    %v390 = vmul.f32 %v375, 1.442695
    %v391 = vpow.pop %v390
    %v392 = vadd.f32 %v377, 1.0
    %v393 = vlog2.pop %v392
    %v394 = vmul.f32 %v393, 0.6931472
    %v395 = vmul.f32 -0.5, %v377
    %v396 = vadd.f32 %v395, 1.0
    %v397 = vmul.f32 %v396, %v377
    %v398 = vand.u32 2147483647, %v377
    %vm399 = vcmp.lt.f32.partialorder %v398, 0.0004427343
    %v400 = vsel %vm399, %v397, %v394
    %v401 = vadd.f32 %v379, 1.0
    %v402 = vlog2.pop %v401
    %v403 = vmul.f32 %v402, 0.6931472
    %v404 = vmul.f32 -0.5, %v379
    %v405 = vadd.f32 %v404, 1.0
    %v406 = vmul.f32 %v405, %v379
    %v407 = vand.u32 2147483647, %v379
    %vm408 = vcmp.lt.f32.partialorder %v407, 0.0004427343
    %v409 = vsel %vm408, %v406, %v403
    %v410 = vadd.f32 %v381, 1.0
    %v411 = vlog2.pop %v410
    %v412 = vmul.f32 %v411, 0.6931472
    %v413 = vmul.f32 -0.5, %v381
    %v414 = vadd.f32 %v413, 1.0
    %v415 = vmul.f32 %v414, %v381
    %v416 = vand.u32 2147483647, %v381
    %vm417 = vcmp.lt.f32.partialorder %v416, 0.0004427343
    %v418 = vsel %vm417, %v415, %v412
    %v419 = vadd.f32 %v383, 1.0
    %v420 = vlog2.pop %v419
    %v421 = vmul.f32 %v420, 0.6931472
    %v422 = vmul.f32 -0.5, %v383
    %v423 = vadd.f32 %v422, 1.0
    %v424 = vmul.f32 %v423, %v383
    %v425 = vand.u32 2147483647, %v383
    %vm426 = vcmp.lt.f32.partialorder %v425, 0.0004427343
    %v427 = vsel %vm426, %v424, %v421
    %v428 = vadd.f32 %v385, 1.0
    %v429 = vlog2.pop %v428
    %v430 = vmul.f32 %v429, 0.6931472
    %v431 = vmul.f32 -0.5, %v385
    %v432 = vadd.f32 %v431, 1.0
    %v433 = vmul.f32 %v432, %v385
    %v434 = vand.u32 2147483647, %v385
    %vm435 = vcmp.lt.f32.partialorder %v434, 0.0004427343
    %v436 = vsel %vm435, %v433, %v430
    %v437 = vadd.f32 %v387, 1.0
    %v438 = vlog2.pop %v437
    %v439 = vmul.f32 %v438, 0.6931472
    %v440 = vmul.f32 -0.5, %v387
    %v441 = vadd.f32 %v440, 1.0
    %v442 = vmul.f32 %v441, %v387
    %v443 = vand.u32 2147483647, %v387
    %vm444 = vcmp.lt.f32.partialorder %v443, 0.0004427343
    %v445 = vsel %vm444, %v442, %v439
    %v446 = vadd.f32 %v389, 1.0
    %v447 = vlog2.pop %v446
    %v448 = vmul.f32 %v447, 0.6931472
    %v449 = vmul.f32 -0.5, %v389
    %v450 = vadd.f32 %v449, 1.0
    %v451 = vmul.f32 %v450, %v389
    %v452 = vand.u32 2147483647, %v389
    %vm453 = vcmp.lt.f32.partialorder %v452, 0.0004427343
    %v454 = vsel %vm453, %v451, %v448
    %v455 = vadd.f32 %v391, 1.0
    %v456 = vlog2.pop %v455
    %v457 = vmul.f32 %v456, 0.6931472
    %v458 = vmul.f32 -0.5, %v391
    %v459 = vadd.f32 %v458, 1.0
    %v460 = vmul.f32 %v459, %v391
    %v461 = vand.u32 2147483647, %v391
    %vm462 = vcmp.lt.f32.partialorder %v461, 0.0004427343
    %v463 = vsel %vm462, %v460, %v457
    %v464 = vadd.f32 %v336, %v400
    %v465 = vadd.f32 %v337, %v409
    %v466 = vadd.f32 %v338, %v418
    %v467 = vadd.f32 %v339, %v427
    %v468 = vadd.f32 %v340, %v436
    %v469 = vadd.f32 %v341, %v445
    %v470 = vadd.f32 %v342, %v454
    %v471 = vadd.f32 %v343, %v463
    %v472 = vsel %vm344, %v352, %v464
    %v473 = vsel %vm345, %v353, %v465
    %v474 = vsel %vm346, %v354, %v466
    %v475 = vsel %vm347, %v355, %v467
    %v476 = vsel %vm348, %v356, %v468
    %v477 = vsel %vm349, %v357, %v469
    %v478 = vsel %vm350, %v358, %v470
    %v479 = vsel %vm351, %v359, %v471
    %v480 = vld [vmem:[%s3] sm:$0xff]
    %v481 = vld [vmem:[%s3 + $0x8] sm:$0xff]
    %v482 = vld [vmem:[%s3 + $0x10] sm:$0xff]
    %v483 = vld [vmem:[%s3 + $0x18] sm:$0xff]
    %vm484 = vcmask 523264
    %v486 = vsel %vm484, %v480, 0
    %v489 = vsel %vm484, %v481, 0
    %v492 = vsel %vm484, %v482, 0
    %v495 = vsel %vm484, %v483, 0
    %497 = vmatprep.subr.mxu0 0.0
    %498 = vmatpush1.msra.mxu0 %v472
    %499 = vmatprep.subr.mxu0 0.0
    %500 = vmatpush1.msra.mxu0 %v473
    %501 = vmatprep.subr.mxu0 0.0
    %502 = vmatpush1.msra.mxu0 %v474
    %503 = vmatprep.subr.mxu0 0.0
    %504 = vmatpush1.msra.mxu0 %v475
    %505 = vmatprep.subr.mxu0 0.0
    %506 = vmatpush1.msra.mxu0 %v476
    %507 = vmatprep.subr.mxu0 0.0
    %508 = vmatpush1.msra.mxu0 %v477
    %509 = vmatprep.subr.mxu0 0.0
    %510 = vmatpush1.msra.mxu0 %v478
    %511 = vmatprep.subr.mxu0 0.0
    %512 = vmatpush1.msra.mxu0 %v479
    %513 = vmatprep.subr.mxu0 0.0
    %514 = vmatpush1.msra.mxu0 0.0
    %515 = vmatprep.subr.mxu0 0.0
    %516 = vmatpush1.msra.mxu0 0.0
    %517 = vmatprep.subr.mxu0 0.0
    %518 = vmatpush1.msra.mxu0 0.0
    %519 = vmatprep.subr.mxu0 0.0
    %520 = vmatpush1.msra.mxu0 0.0
    %521 = vmatprep.subr.mxu0 0.0
    %522 = vmatpush1.msra.mxu0 0.0
    %523 = vmatprep.subr.mxu0 0.0
    %524 = vmatpush1.msra.mxu0 0.0
    %525 = vmatprep.subr.mxu0 0.0
    %526 = vmatpush1.msra.mxu0 0.0
    %527 = vmatprep.subr.mxu0 0.0
    %528 = vmatpush1.msra.mxu0 0.0
    %529 = vmatprep.subr.mxu0 0.0
    %530 = vmatpush1.msra.mxu0 0.0
    %531 = vmatprep.subr.mxu0 0.0
    %532 = vmatpush1.msra.mxu0 0.0
    %533 = vmatprep.subr.mxu0 0.0
    %534 = vmatpush1.msra.mxu0 0.0
    %535 = vmatprep.subr.mxu0 0.0
    %536 = vmatpush1.msra.mxu0 0.0
    %537 = vmatprep.subr.mxu0 0.0
    %538 = vmatpush1.msra.mxu0 0.0
    %539 = vmatprep.subr.mxu0 0.0
    %540 = vmatpush1.msra.mxu0 0.0
    %541 = vmatprep.subr.mxu0 0.0
    %542 = vmatpush1.msra.mxu0 0.0
    %543 = vmatprep.subr.mxu0 0.0
    %544 = vmatpush1.msra.mxu0 0.0
    %545 = vmatprep.subr.mxu0 0.0
    %546 = vmatpush1.msra.mxu0 0.0
    %547 = vmatprep.subr.mxu0 0.0
    %548 = vmatpush1.msra.mxu0 0.0
    %549 = vmatprep.subr.mxu0 0.0
    %550 = vmatpush1.msra.mxu0 0.0
    %551 = vmatprep.subr.mxu0 0.0
    %552 = vmatpush1.msra.mxu0 0.0
    %553 = vmatprep.subr.mxu0 0.0
    %554 = vmatpush1.msra.mxu0 0.0
    %555 = vmatprep.subr.mxu0 0.0
    %556 = vmatpush1.msra.mxu0 0.0
    %557 = vmatprep.subr.mxu0 0.0
    %558 = vmatpush1.msra.mxu0 0.0
    %559 = vmatprep.subr.mxu0 0.0
    %560 = vmatpush1.msra.mxu0 0.0
    %561 = vmatprep.mubr.f32.mxu0 0.0
    %562 = vmatmul.mubr.f32.gmra.mrb[0].mxu0 %v486
    %v563 = vpop.f32.mrb[0].mxu0
    %v564 = vadd.f32 0.0, %v563
    %v565 = vpop.f32.mrb[0].mxu0
    %566 = vmatprep.mubr.f32.mxu0 0.0
    %567 = vmatmul.mubr.f32.gmra.mrb[0].mxu0 %v489
    %v568 = vpop.f32.mrb[0].mxu0
    %v569 = vadd.f32 0.0, %v568
    %v570 = vpop.f32.mrb[0].mxu0
    %571 = vmatprep.mubr.f32.mxu0 0.0
    %572 = vmatmul.mubr.f32.gmra.mrb[0].mxu0 %v492
    %v573 = vpop.f32.mrb[0].mxu0
    %v574 = vadd.f32 0.0, %v573
    %v575 = vpop.f32.mrb[0].mxu0
    %576 = vmatprep.mubr.f32.mxu0 0.0
    %577 = vmatmul.mubr.f32.gmra.mrb[0].mxu0 %v495
    %v578 = vpop.f32.mrb[0].mxu0
    %v579 = vadd.f32 0.0, %v578
    %v580 = vpop.f32.mrb[0].mxu0
    %581 = vdwg.mxu0
    %582 = vst [vmem:[#allocation2] sm:$0xff] %v564
    %583 = vst [vmem:[#allocation2 + $0x8] sm:$0xff] %v569
    %584 = vst [vmem:[#allocation2 + $0x10] sm:$0xff] %v574
    %585 = vst [vmem:[#allocation2 + $0x18] sm:$0xff] %v579
    // Predicated region
    $region18: #{tpu_custom_call.1} parent=1 // pred_check
      _
    $region19: #{tpu_custom_call.1} parent=1 // pred_check_branch
      %587 = sbr.rel (0) target = $region21
    $region20: #{tpu_custom_call.1} parent=1 // pred_region
      %s589 = ssub.s32 512, 512
      %590 = vsyncadd [#allocation3], %s589
      %s591 = sshll.u32 [#allocation2], 4
      %s592 = int_to_ptr.vmem [resolvable:$true] %s591
      %597 = dma.vmem_to_hbm [thread:$0]  %s592, 512, %s4, [#allocation3], 128, 128, 8
    $region21: #{tpu_custom_call.1} parent=1 // pred_fallthru
      _
    // Predicated region
    $region22: #{tpu_custom_call.1} parent=1 // pred_check
      _
    $region23: #{tpu_custom_call.1} parent=1 // pred_check_branch
      %599 = sbr.rel (0) target = $region25
    $region24: #{tpu_custom_call.1} parent=1 // pred_region
      %600 = dma.done [#allocation3], 512
    $region25: #{tpu_custom_call.1} parent=1 // pred_fallthru
      _
    %601 = vsyncpa [#allocation3], 1

</llo_original>
